<compile_context>
chip_gen: v7x
topology: tpu7x:2x2x1
jax: 0.10.0
libtpu: 0.0.40
codegen_flags: <defaults>
</compile_context>

<pallas_src>
import functools

import jax
import jax.numpy as jnp
from jax import lax
from jax.experimental import pallas as pl
from jax.experimental.pallas import tpu as pltpu


_INV_SQRT2 = 0.7071067811865476


def _gelu_exact(x):
    # PyTorch nn.GELU() default is the exact (erf) formulation; keep it for
    # numerical fidelity (tanh/EUP form would deviate from the module spec).
    return 0.5 * x * (1.0 + lax.erf(x * _INV_SQRT2))


def _round_up(x, m):
    return ((x + m - 1) // m) * m


def _vmem_capacity_bytes():
    try:
        info = pltpu.get_tpu_info()
        cap = int(getattr(info, "vmem_capacity_bytes", 0))
        if cap > 0:
            return cap
    except Exception:
        pass
    return 128 * 1024 * 1024  # conservative default (v5e/v6e physical)


def _const_spec(shape):
    # Constant index map -> same block every grid step; single-buffer it so
    # resident weights/biases are not needlessly double-buffered in VMEM.
    zeros = (0,) * len(shape)
    return pl.BlockSpec(
        shape,
        lambda *args: zeros,
        pipeline_mode=pl.Buffered(buffer_count=1),
    )


# ----------------------------------------------------------------------------
# Kernels
# ----------------------------------------------------------------------------

def _mlp_resident_kernel(x_ref, w1_ref, b1_ref, w2_ref, b2_ref, o_ref):
    # x_ref:  (tm, C)  bf16 tile of tokens
    # w1_ref: (C, H)   bf16 fc1 weight (pre-transposed, lane = H)
    # b1_ref: (1, H)   f32 fc1 bias
    # w2_ref: (H, O)   bf16 fc2 weight (pre-transposed, lane = O)
    # b2_ref: (1, O)   f32 fc2 bias
    # o_ref:  (tm, O)
    h = jnp.dot(x_ref[...], w1_ref[...], preferred_element_type=jnp.float32)
    h = _gelu_exact(h + b1_ref[...])
    y = jnp.dot(h.astype(w2_ref.dtype), w2_ref[...],
                preferred_element_type=jnp.float32)
    o_ref[...] = (y + b2_ref[...]).astype(o_ref.dtype)


def _mlp_stream_kernel(x_ref, w1_ref, b1_ref, w2_ref, b2_ref, o_ref, acc_ref):
    # H-tiled fallback: grid = (m_tiles, h_tiles); accumulate fc2 over H tiles.
    # x_ref:  (tm, C)    w1_ref: (C, th)   b1_ref: (1, th)
    # w2_ref: (th, O)    b2_ref: (1, O)    o_ref: (tm, O)
    # acc_ref: (tm, O) f32 scratch, persists across the h axis.
    hi = pl.program_id(1)

    @pl.when(hi == 0)
    def _():
        acc_ref[...] = jnp.zeros_like(acc_ref)

    h = jnp.dot(x_ref[...], w1_ref[...], preferred_element_type=jnp.float32)
    h = _gelu_exact(h + b1_ref[...])
    acc_ref[...] += jnp.dot(h.astype(w2_ref.dtype), w2_ref[...],
                            preferred_element_type=jnp.float32)

    @pl.when(hi == pl.num_programs(1) - 1)
    def _():
        o_ref[...] = (acc_ref[...] + b2_ref[...]).astype(o_ref.dtype)


# ----------------------------------------------------------------------------
# Wrappers
# ----------------------------------------------------------------------------

def prepare_mlp_params(w1, b1, w2, b2, mxu_dtype=jnp.bfloat16):
    """One-time conversion from PyTorch layout ((H,C)/(O,H) weights) to kernel
    layout: (C,H)/(H,O) bf16 weights, f32 row-vector biases.  Call once at
    init -- NOT inside the jitted forward."""
    w1_t = jnp.transpose(w1).astype(mxu_dtype)          # (C, H)
    w2_t = jnp.transpose(w2).astype(mxu_dtype)          # (H, O)
    b1_f = b1.astype(jnp.float32).reshape(1, -1)         # (1, H)
    b2_f = b2.astype(jnp.float32).reshape(1, -1)         # (1, O)
    return w1_t, b1_f, w2_t, b2_f


@functools.partial(jax.jit, static_argnames=("tm", "th", "mode"))
def mlp_pallas(x, w1_t, b1_f, w2_t, b2_f, *, tm=256, th=512, mode="auto"):
    """x: (B, N, C). w1_t: (C, H), b1_f: (1, H), w2_t: (H, O), b2_f: (1, O)
    (kernel layout from prepare_mlp_params).  Returns (B, N, O) in x.dtype."""
    B, N, C = x.shape
    Cw, H = w1_t.shape
    Hw, O = w2_t.shape
    assert Cw == C and Hw == H
    M = B * N
    out_dtype = x.dtype
    mxu_dtype = w1_t.dtype
    xbytes = jnp.dtype(mxu_dtype).itemsize
    wbytes = jnp.dtype(w1_t.dtype).itemsize
    obytes = jnp.dtype(out_dtype).itemsize

    # Token tiling: clean multiples of 128 (MXU / (8,128) vreg tiles).
    tm = _round_up(max(tm, 128), 128)
    tm = min(tm, _round_up(M, 128))
    m_pad = _round_up(M, tm)
    grid_m = m_pad // tm

    # Generation-aware VMEM budget (~18% headroom on the physical capacity).
    cap = _vmem_capacity_bytes()
    budget = int(cap * 0.82)

    resident_need = (
        (C * H + H * O) * wbytes       # weights, single-buffered
        + (H + O) * 4                  # f32 biases
        + 2 * tm * C * xbytes          # x tile (double-buffered)
        + 2 * tm * O * obytes          # out tile (double-buffered)
        + tm * H * 4 + tm * O * 4      # f32 intermediates
    )

    if mode == "auto":
        mode = "resident" if int(resident_need * 1.25) <= budget else "stream"

    x2d = x.reshape(M, C).astype(mxu_dtype)
    if m_pad != M:
        x2d = jnp.pad(x2d, ((0, m_pad - M), (0, 0)))

    if mode == "resident":
        vmem_limit = int(min(budget,
                             max(int(resident_need * 1.5), 16 * 1024 * 1024)))
        cost = pl.CostEstimate(
            flops=2 * m_pad * (C * H + H * O),
            transcendentals=m_pad * H,
            bytes_accessed=(m_pad * C * xbytes + m_pad * O * obytes
                            + (C * H + H * O) * wbytes + (H + O) * 4),
        )
        out2d = pl.pallas_call(
            _mlp_resident_kernel,
            out_shape=jax.ShapeDtypeStruct((m_pad, O), out_dtype),
            grid_spec=pltpu.PrefetchScalarGridSpec(
                num_scalar_prefetch=0,
                grid=(grid_m,),
                in_specs=[
                    pl.BlockSpec((tm, C), lambda i: (i, 0)),
                    _const_spec((C, H)),
                    _const_spec((1, H)),
                    _const_spec((H, O)),
                    _const_spec((1, O)),
                ],
                out_specs=pl.BlockSpec((tm, O), lambda i: (i, 0)),
            ),
            compiler_params=pltpu.CompilerParams(
                dimension_semantics=("parallel",),
                vmem_limit_bytes=vmem_limit,
            ),
            cost_estimate=cost,
        )(x2d, w1_t, b1_f, w2_t, b2_f)
    else:
        # --- H-tiled streaming fallback (weights too large for VMEM budget) --
        th_ = _round_up(min(th, _round_up(H, 128)), 128)

        def _stream_need(th_c, wb_c):
            return (wb_c * (C * th_c + th_c * O) * wbytes   # streamed weights
                    + 2 * 2 * th_c * 4 + O * 4              # b1 tiles + b2
                    + 2 * tm * C * xbytes                   # x tile
                    + 2 * tm * O * obytes                   # out tile
                    + tm * O * 4                            # acc scratch
                    + tm * th_c * 4)                        # f32 intermediate

        while th_ > 128 and int(_stream_need(th_, 3) * 1.25) > budget:
            th_ = _round_up(th_ // 2, 128)

        h_pad = _round_up(H, th_)
        if h_pad != H:
            # Zero-padded H columns: GELU(0 + 0) = 0, times zero w2 rows -> 0.
            w1_p = jnp.pad(w1_t, ((0, 0), (0, h_pad - H)))
            b1_p = jnp.pad(b1_f, ((0, 0), (0, h_pad - H)))
            w2_p = jnp.pad(w2_t, ((0, h_pad - H), (0, 0)))
        else:
            w1_p, b1_p, w2_p = w1_t, b1_f, w2_t
        grid_h = h_pad // th_
        wb = 3 if grid_h >= 3 else 2   # deeper pipeline hides weight DMA

        vmem_limit = int(min(budget,
                             max(int(_stream_need(th_, wb) * 1.5),
                                 16 * 1024 * 1024)))
        cost = pl.CostEstimate(
            flops=2 * m_pad * (C * h_pad + h_pad * O),
            transcendentals=m_pad * h_pad,
            bytes_accessed=(m_pad * C * xbytes + m_pad * O * obytes
                            + grid_m * (C * h_pad + h_pad * O) * wbytes
                            + (h_pad + O) * 4),
        )
        out2d = pl.pallas_call(
            _mlp_stream_kernel,
            out_shape=jax.ShapeDtypeStruct((m_pad, O), out_dtype),
            grid_spec=pltpu.PrefetchScalarGridSpec(
                num_scalar_prefetch=0,
                grid=(grid_m, grid_h),
                in_specs=[
                    pl.BlockSpec((tm, C), lambda i, h: (i, 0)),
                    pl.BlockSpec((C, th_), lambda i, h: (0, h),
                                 pipeline_mode=pl.Buffered(buffer_count=wb)),
                    pl.BlockSpec((1, th_), lambda i, h: (0, h)),
                    pl.BlockSpec((th_, O), lambda i, h: (h, 0),
                                 pipeline_mode=pl.Buffered(buffer_count=wb)),
                    _const_spec((1, O)),
                ],
                out_specs=pl.BlockSpec((tm, O), lambda i, h: (i, 0)),
                scratch_shapes=[pltpu.VMEM((tm, O), jnp.float32)],
            ),
            compiler_params=pltpu.CompilerParams(
                dimension_semantics=("parallel", "arbitrary"),
                vmem_limit_bytes=vmem_limit,
            ),
            cost_estimate=cost,
        )(x2d, w1_p, b1_p, w2_p, b2_f)

    return out2d[:M].reshape(B, N, O)


def mlp_forward(x, w1, b1, w2, b2, **kw):
    """Convenience entry taking PyTorch-layout params (fc1.weight (H,C), ...)."""
    return mlp_pallas(x, *prepare_mlp_params(w1, b1, w2, b2), **kw)


# ----------------------------------------------------------------------------
# Reference + test
# ----------------------------------------------------------------------------

def mlp_reference(x, w1, b1, w2, b2):
    h = jnp.einsum("bnc,hc->bnh", x, w1) + b1
    h = _gelu_exact(h)
    return jnp.einsum("bnh,oh->bno", h, w2) + b2


def _make_params(key, C, H, O):
    k1, k2, k3, k4 = jax.random.split(key, 4)
    w1 = jax.random.normal(k1, (H, C), dtype=jnp.float32) * (1.0 / jnp.sqrt(C))
    b1 = jax.random.normal(k2, (H,), dtype=jnp.float32) * 0.01
    w2 = jax.random.normal(k3, (O, H), dtype=jnp.float32) * (1.0 / jnp.sqrt(H))
    b2 = jax.random.normal(k4, (O,), dtype=jnp.float32) * 0.01
    return w1, b1, w2, b2


if __name__ == "__main__":
    key = jax.random.PRNGKey(0)

    # Test 1: small ViT-like shapes (batch=2, seq=8, in=32, hidden=64, out=32),
    # auto mode -> resident path (weights fully VMEM-resident, bf16 MXU).
    B, N, C, H = 2, 8, 32, 64
    O = C
    kx, kp = jax.random.split(key)
    x = jax.random.normal(kx, (B, N, C), dtype=jnp.float32)
    w1, b1, w2, b2 = _make_params(kp, C, H, O)
    params = prepare_mlp_params(w1, b1, w2, b2)

    out = jax.block_until_ready(mlp_pallas(x, *params))
    ref = mlp_reference(x, w1, b1, w2, b2)
    assert out.shape == (B, N, O)
    err = float(jnp.max(jnp.abs(out - ref)))
    # bf16 MXU inputs with f32 accumulation -> widened tolerance vs f32 ref.
    assert err < 5e-2, err

    # Test 2: M not a multiple of the tile (B=2, N=9 -> M=18) + forced
    # H-streaming fallback path with 2 hidden tiles (H=256, th=128) to
    # exercise the pl.when init / accumulate / finalize accumulator.
    B2, N2, H2 = 2, 9, 256
    kx2, kp2 = jax.random.split(kp)
    x2 = jax.random.normal(kx2, (B2, N2, C), dtype=jnp.float32)
    w1b, b1b, w2b, b2b = _make_params(kp2, C, H2, O)
    params2 = prepare_mlp_params(w1b, b1b, w2b, b2b)

    out2 = jax.block_until_ready(
        mlp_pallas(x2, *params2, mode="stream", th=128))
    ref2 = mlp_reference(x2, w1b, b1b, w2b, b2b)
    assert out2.shape == (B2, N2, O)
    err2 = float(jnp.max(jnp.abs(out2 - ref2)))
    assert err2 < 5e-2, err2

    # TODO(synk): nn.Dropout with p > 0 (training mode) is not implemented;
    # the module default drop=0.0 makes it an identity in this forward pass.
    print("KERNEL_OK")
</pallas_src>

<mosaic_0001>
module attributes {stable_mosaic.version = 11 : i64} {
  func.func @_mlp_resident_kernel(%arg0: i32, %arg1: memref<128x32xbf16, #tpu.memory_space<vmem>>, %arg2: memref<32x64xbf16, #tpu.memory_space<vmem>>, %arg3: memref<1x64xf32, #tpu.memory_space<vmem>>, %arg4: memref<64x32xbf16, #tpu.memory_space<vmem>>, %arg5: memref<1x32xf32, #tpu.memory_space<vmem>>, %arg6: memref<128x32xf32, #tpu.memory_space<vmem>>) attributes {dimension_semantics = [#tpu.dimension_semantics<parallel>], iteration_bounds = array<i64: 1>, scalar_prefetch = 0 : i64, scratch_operands = 0 : i64, tpu.core_type = #tpu.core_type<tc>, window_params = [{transform_indices = @transform_0, window_bounds = array<i64: 128, 32>}, {pipeline_mode = #tpu.pipeline_mode<synchronous>, transform_indices = @transform_1, window_bounds = array<i64: 32, 64>}, {pipeline_mode = #tpu.pipeline_mode<synchronous>, transform_indices = @transform_2, window_bounds = array<i64: 1, 64>}, {pipeline_mode = #tpu.pipeline_mode<synchronous>, transform_indices = @transform_3, window_bounds = array<i64: 64, 32>}, {pipeline_mode = #tpu.pipeline_mode<synchronous>, transform_indices = @transform_4, window_bounds = array<i64: 1, 32>}, {transform_indices = @transform_5, window_bounds = array<i64: 128, 32>}]} {
    %c0 = arith.constant 0 : index
    %c0_0 = arith.constant 0 : index
    %0 = vector.load %arg1[%c0, %c0_0] : memref<128x32xbf16, #tpu.memory_space<vmem>>, vector<128x32xbf16>
    %c0_1 = arith.constant 0 : index
    %c0_2 = arith.constant 0 : index
    %1 = vector.load %arg2[%c0_1, %c0_2] : memref<32x64xbf16, #tpu.memory_space<vmem>>, vector<32x64xbf16>
    %cst = arith.constant dense<0.000000e+00> : vector<128x64xf32>
    %2 = tpu.matmul %0, %1, %cst {dimension_numbers = #tpu.dot_dimension_numbers<[1], [0], [0], [1], [0, 0, 1, 1], [], []>} : vector<128x32xbf16>, vector<32x64xbf16>, vector<128x64xf32> -> vector<128x64xf32>
    %c0_3 = arith.constant 0 : index
    %c0_4 = arith.constant 0 : index
    %3 = vector.load %arg3[%c0_3, %c0_4] : memref<1x64xf32, #tpu.memory_space<vmem>>, vector<1x64xf32>
    %4 = vector.broadcast %3 : vector<1x64xf32> to vector<128x64xf32>
    %5 = arith.addf %2, %4 : vector<128x64xf32>
    %cst_5 = arith.constant 5.000000e-01 : f32
    %6 = vector.broadcast %cst_5 : f32 to vector<128x64xf32>
    %7 = arith.mulf %6, %5 : vector<128x64xf32>
    %cst_6 = arith.constant 0.707106769 : f32
    %8 = vector.broadcast %cst_6 : f32 to vector<128x64xf32>
    %9 = arith.mulf %5, %8 : vector<128x64xf32>
    %10 = math.erf %9 : vector<128x64xf32>
    %cst_7 = arith.constant 1.000000e+00 : f32
    %11 = vector.broadcast %cst_7 : f32 to vector<128x64xf32>
    %12 = arith.addf %11, %10 : vector<128x64xf32>
    %13 = arith.mulf %7, %12 : vector<128x64xf32>
    %14 = arith.truncf %13 : vector<128x64xf32> to vector<128x64xbf16>
    %c0_8 = arith.constant 0 : index
    %c0_9 = arith.constant 0 : index
    %15 = vector.load %arg4[%c0_8, %c0_9] : memref<64x32xbf16, #tpu.memory_space<vmem>>, vector<64x32xbf16>
    %cst_10 = arith.constant dense<0.000000e+00> : vector<128x32xf32>
    %16 = tpu.matmul %14, %15, %cst_10 {dimension_numbers = #tpu.dot_dimension_numbers<[1], [0], [0], [1], [0, 0, 1, 1], [], []>} : vector<128x64xbf16>, vector<64x32xbf16>, vector<128x32xf32> -> vector<128x32xf32>
    %c0_11 = arith.constant 0 : index
    %c0_12 = arith.constant 0 : index
    %17 = vector.load %arg5[%c0_11, %c0_12] : memref<1x32xf32, #tpu.memory_space<vmem>>, vector<1x32xf32>
    %18 = vector.broadcast %17 : vector<1x32xf32> to vector<128x32xf32>
    %19 = arith.addf %16, %18 : vector<128x32xf32>
    %c0_13 = arith.constant 0 : index
    %c0_14 = arith.constant 0 : index
    %20 = vector.load %arg6[%c0_13, %c0_14] : memref<128x32xf32, #tpu.memory_space<vmem>>, vector<128x32xf32>
    tpu.vector_store %arg6[%c0_13, %c0_14], %19 {strides = array<i32>} : memref<128x32xf32, #tpu.memory_space<vmem>>, vector<128x32xf32>,
    return
  }
  func.func @transform_0(%arg0: i32) -> (i32, i32) {
    %c0_i32 = arith.constant 0 : i32
    %c0_i32_0 = arith.constant 0 : i32
    return %arg0, %c0_i32 : i32, i32
  }
  func.func @transform_1(%arg0: i32) -> (i32, i32) {
    %c0_i32 = arith.constant 0 : i32
    %c0_i32_0 = arith.constant 0 : i32
    %c0_i32_1 = arith.constant 0 : i32
    return %c0_i32, %c0_i32_0 : i32, i32
  }
  func.func @transform_2(%arg0: i32) -> (i32, i32) {
    %c0_i32 = arith.constant 0 : i32
    %c0_i32_0 = arith.constant 0 : i32
    %c0_i32_1 = arith.constant 0 : i32
    return %c0_i32, %c0_i32_0 : i32, i32
  }
  func.func @transform_3(%arg0: i32) -> (i32, i32) {
    %c0_i32 = arith.constant 0 : i32
    %c0_i32_0 = arith.constant 0 : i32
    %c0_i32_1 = arith.constant 0 : i32
    return %c0_i32, %c0_i32_0 : i32, i32
  }
  func.func @transform_4(%arg0: i32) -> (i32, i32) {
    %c0_i32 = arith.constant 0 : i32
    %c0_i32_0 = arith.constant 0 : i32
    %c0_i32_1 = arith.constant 0 : i32
    return %c0_i32, %c0_i32_0 : i32, i32
  }
  func.func @transform_5(%arg0: i32) -> (i32, i32) {
    %c0_i32 = arith.constant 0 : i32
    %c0_i32_0 = arith.constant 0 : i32
    return %arg0, %c0_i32 : i32, i32
  }
}

</mosaic_0001>

<llo_original>
// kernel: mlp_pallas.1
$region0: #{mlp_pallas.1}
  #allocation0 [shape = 'u32[]', space=smem, size = 0x4, offset = 0x4, fixed_abs, tag = 'smem constant byte address 0x4 - core index']
  #allocation1 [shape = 'u32[144,128]{1,0:T(1,128)}', space=vmem, size = 0x12000, scoped, tag = 'internal scratch']
  %s0 = inlined_call_operand.vmem [shape: bf16[128,32], index: 0, kind: input, shape index: {}]
  %s1 = inlined_call_operand.vmem [shape: bf16[32,64], index: 1, kind: input, shape index: {}]
  %s2 = inlined_call_operand.vmem [shape: f32[1,64], index: 2, kind: input, shape index: {}]
  %s3 = inlined_call_operand.vmem [shape: bf16[64,32], index: 3, kind: input, shape index: {}]
  %s4 = inlined_call_operand.vmem [shape: f32[1,32], index: 4, kind: input, shape index: {}]
  %s5 = inlined_call_operand.vmem [shape: f32[128,32], index: 5, kind: output, shape index: {}]
  %s6 = sld [smem:[#allocation0]]
  $region30: #{mlp_pallas.1} parent=0
    _
  %s8 = ssub.s32 1, %s6
  %s9 = scalar_select 0, %s8, %s6
  // Predicated region
  $region2: #{mlp_pallas.1} parent=0 // pred_check
    _
  $region3: #{mlp_pallas.1} parent=0 // pred_check_branch
    %11 = sbr.rel (0) target = $region5
  $region4: #{mlp_pallas.1} parent=0 // pred_region
    _
  $region5: #{mlp_pallas.1} parent=0 // pred_fallthru
    _
  // Predicated region
  $region6: #{mlp_pallas.1} parent=0 // pred_check
    _
  $region7: #{mlp_pallas.1} parent=0 // pred_check_branch
    %13 = sbr.rel (0) target = $region9
  $region8: #{mlp_pallas.1} parent=0 // pred_region
    _
  $region9: #{mlp_pallas.1} parent=0 // pred_fallthru
    _
  // Predicated region
  $region10: #{mlp_pallas.1} parent=0 // pred_check
    _
  $region11: #{mlp_pallas.1} parent=0 // pred_check_branch
    %15 = sbr.rel (0) target = $region13
  $region12: #{mlp_pallas.1} parent=0 // pred_region
    _
  $region13: #{mlp_pallas.1} parent=0 // pred_fallthru
    _
  // Predicated region
  $region14: #{mlp_pallas.1} parent=0 // pred_check
    _
  $region15: #{mlp_pallas.1} parent=0 // pred_check_branch
    %17 = sbr.rel (0) target = $region17
  $region16: #{mlp_pallas.1} parent=0 // pred_region
    _
  $region17: #{mlp_pallas.1} parent=0 // pred_fallthru
    _
  // Predicated region
  $region18: #{mlp_pallas.1} parent=0 // pred_check
    _
  $region19: #{mlp_pallas.1} parent=0 // pred_check_branch
    %19 = sbr.rel (0) target = $region21
  $region20: #{mlp_pallas.1} parent=0 // pred_region
    _
  $region21: #{mlp_pallas.1} parent=0 // pred_fallthru
    _
  %v21 = vld [vmem:[%s0] sm:$0xf]
  %v22 = vld [vmem:[%s0 + $0x4] sm:$0xf]
  %v23 = vld [vmem:[%s0 + $0x8] sm:$0xf]
  %v24 = vld [vmem:[%s0 + $0xc] sm:$0xf]
  %v25 = vld [vmem:[%s0 + $0x10] sm:$0xf]
  %v26 = vld [vmem:[%s0 + $0x14] sm:$0xf]
  %v27 = vld [vmem:[%s0 + $0x18] sm:$0xf]
  %v28 = vld [vmem:[%s0 + $0x1c] sm:$0xf]
  %v29 = vld [vmem:[%s0 + $0x20] sm:$0xf]
  %v30 = vld [vmem:[%s0 + $0x24] sm:$0xf]
  %v31 = vld [vmem:[%s0 + $0x28] sm:$0xf]
  %v32 = vld [vmem:[%s0 + $0x2c] sm:$0xf]
  %v33 = vld [vmem:[%s0 + $0x30] sm:$0xf]
  %v34 = vld [vmem:[%s0 + $0x34] sm:$0xf]
  %v35 = vld [vmem:[%s0 + $0x38] sm:$0xf]
  %v36 = vld [vmem:[%s0 + $0x3c] sm:$0xf]
  %v37 = vld [vmem:[%s1] sm:$0xf]
  %v38 = vld [vmem:[%s1 + $0x4] sm:$0xf]
  %v39 = vld [vmem:[%s1 + $0x8] sm:$0xf]
  %v40 = vld [vmem:[%s1 + $0xc] sm:$0xf]
  %v41 = vld [vmem:[%s2] sm:$0x1]
  %v43 = vlaneseq
  %v44 = vshrl.u32 %v43, 7
  %v45 = vsub.s32 0, %v44
  %v46 = vrot.slane %v41, %v45
  %v64 = vunpack.c.l.b16 %v21
  %v65 = vunpack.c.l.b16 %v22
  %v66 = vunpack.c.l.b16 %v23
  %v67 = vunpack.c.l.b16 %v24
  %v68 = vunpack.c.l.b16 %v25
  %v69 = vunpack.c.l.b16 %v26
  %v70 = vunpack.c.l.b16 %v27
  %v71 = vunpack.c.l.b16 %v28
  %v72 = vunpack.c.l.b16 %v29
  %v73 = vunpack.c.l.b16 %v30
  %v74 = vunpack.c.l.b16 %v31
  %v75 = vunpack.c.l.b16 %v32
  %v76 = vunpack.c.l.b16 %v33
  %v77 = vunpack.c.l.b16 %v34
  %v78 = vunpack.c.l.b16 %v35
  %v79 = vunpack.c.l.b16 %v36
  %v80 = vpack.c.b16 %v65, %v64
  %v81 = vpack.c.b16 %v67, %v66
  %v82 = vpack.c.b16 %v69, %v68
  %v83 = vpack.c.b16 %v71, %v70
  %v84 = vpack.c.b16 %v73, %v72
  %v85 = vpack.c.b16 %v75, %v74
  %v86 = vpack.c.b16 %v77, %v76
  %v87 = vpack.c.b16 %v79, %v78
  %v92 = vunpack.c.l.b16 %v37
  %v93 = vunpack.c.l.b16 %v38
  %v94 = vunpack.c.l.b16 %v39
  %v95 = vunpack.c.l.b16 %v40
  %v96 = vpack.c.b16 %v93, %v92
  %v97 = vpack.c.b16 %v95, %v94
  %vm100 = vcmask 261120
  %v102 = vsel %vm100, %v80, 0
  %v105 = vsel %vm100, %v81, 0
  %v108 = vsel %vm100, %v82, 0
  %v111 = vsel %vm100, %v83, 0
  %v114 = vsel %vm100, %v84, 0
  %v117 = vsel %vm100, %v85, 0
  %v120 = vsel %vm100, %v86, 0
  %v123 = vsel %vm100, %v87, 0
  %125 = vmatprep.subr.bf16.mxu0 0
  %126 = vmatpush1.bf16.msra.mxu0 %v96
  %127 = vmatprep.subr.bf16.mxu0 0
  %128 = vmatpush1.bf16.msra.mxu0 %v97
  %129 = vmatprep.subr.bf16.mxu0 0
  %130 = vmatpush1.bf16.msra.mxu0 0
  %131 = vmatprep.subr.bf16.mxu0 0
  %132 = vmatpush1.bf16.msra.mxu0 0
  %133 = vmatprep.subr.bf16.mxu0 0
  %134 = vmatpush1.bf16.msra.mxu0 0
  %135 = vmatprep.subr.bf16.mxu0 0
  %136 = vmatpush1.bf16.msra.mxu0 0
  %137 = vmatprep.subr.bf16.mxu0 0
  %138 = vmatpush1.bf16.msra.mxu0 0
  %139 = vmatprep.subr.bf16.mxu0 0
  %140 = vmatpush1.bf16.msra.mxu0 0
  %141 = vmatprep.subr.bf16.mxu0 0
  %142 = vmatpush1.bf16.msra.mxu0 0
  %143 = vmatprep.subr.bf16.mxu0 0
  %144 = vmatpush1.bf16.msra.mxu0 0
  %145 = vmatprep.subr.bf16.mxu0 0
  %146 = vmatpush1.bf16.msra.mxu0 0
  %147 = vmatprep.subr.bf16.mxu0 0
  %148 = vmatpush1.bf16.msra.mxu0 0
  %149 = vmatprep.subr.bf16.mxu0 0
  %150 = vmatpush1.bf16.msra.mxu0 0
  %151 = vmatprep.subr.bf16.mxu0 0
  %152 = vmatpush1.bf16.msra.mxu0 0
  %153 = vmatprep.subr.bf16.mxu0 0
  %154 = vmatpush1.bf16.msra.mxu0 0
  %155 = vmatprep.subr.bf16.mxu0 0
  %156 = vmatpush1.bf16.msra.mxu0 0
  %157 = vmatprep.mubr.bf16.mxu0 0
  %158 = vmatmul.mubr.bf16.gmra.mrb[0].mxu0 %v102
  %v159 = vpop.f32.mrb[0].mxu0
  %v160 = vadd.f32 %v46, %v159
  %v161 = vpop.f32.mrb[0].mxu0
  %v162 = vpop.f32.mrb[0].mxu0
  %v163 = vadd.f32 %v46, %v162
  %v164 = vpop.f32.mrb[0].mxu0
  %165 = vmatprep.mubr.bf16.mxu0 0
  %166 = vmatmul.mubr.bf16.gmra.mrb[0].mxu0 %v105
  %v167 = vpop.f32.mrb[0].mxu0
  %v168 = vadd.f32 %v46, %v167
  %v169 = vpop.f32.mrb[0].mxu0
  %v170 = vpop.f32.mrb[0].mxu0
  %v171 = vadd.f32 %v46, %v170
  %v172 = vpop.f32.mrb[0].mxu0
  %173 = vmatprep.mubr.bf16.mxu0 0
  %174 = vmatmul.mubr.bf16.gmra.mrb[0].mxu0 %v108
  %v175 = vpop.f32.mrb[0].mxu0
  %v176 = vadd.f32 %v46, %v175
  %v177 = vpop.f32.mrb[0].mxu0
  %v178 = vpop.f32.mrb[0].mxu0
  %v179 = vadd.f32 %v46, %v178
  %v180 = vpop.f32.mrb[0].mxu0
  %181 = vmatprep.mubr.bf16.mxu0 0
  %182 = vmatmul.mubr.bf16.gmra.mrb[0].mxu0 %v111
  %v183 = vpop.f32.mrb[0].mxu0
  %v184 = vadd.f32 %v46, %v183
  %v185 = vpop.f32.mrb[0].mxu0
  %v186 = vpop.f32.mrb[0].mxu0
  %v187 = vadd.f32 %v46, %v186
  %v188 = vpop.f32.mrb[0].mxu0
  %189 = vmatprep.mubr.bf16.mxu0 0
  %190 = vmatmul.mubr.bf16.gmra.mrb[0].mxu0 %v114
  %v191 = vpop.f32.mrb[0].mxu0
  %v192 = vadd.f32 %v46, %v191
  %v193 = vpop.f32.mrb[0].mxu0
  %v194 = vpop.f32.mrb[0].mxu0
  %v195 = vadd.f32 %v46, %v194
  %v196 = vpop.f32.mrb[0].mxu0
  %197 = vmatprep.mubr.bf16.mxu0 0
  %198 = vmatmul.mubr.bf16.gmra.mrb[0].mxu0 %v117
  %v199 = vpop.f32.mrb[0].mxu0
  %v200 = vadd.f32 %v46, %v199
  %v201 = vpop.f32.mrb[0].mxu0
  %v202 = vpop.f32.mrb[0].mxu0
  %v203 = vadd.f32 %v46, %v202
  %v204 = vpop.f32.mrb[0].mxu0
  %205 = vmatprep.mubr.bf16.mxu0 0
  %206 = vmatmul.mubr.bf16.gmra.mrb[0].mxu0 %v120
  %v207 = vpop.f32.mrb[0].mxu0
  %v208 = vadd.f32 %v46, %v207
  %v209 = vpop.f32.mrb[0].mxu0
  %v210 = vpop.f32.mrb[0].mxu0
  %v211 = vadd.f32 %v46, %v210
  %v212 = vpop.f32.mrb[0].mxu0
  %213 = vmatprep.mubr.bf16.mxu0 0
  %214 = vmatmul.mubr.bf16.gmra.mrb[0].mxu0 %v123
  %v215 = vpop.f32.mrb[0].mxu0
  %v216 = vadd.f32 %v46, %v215
  %v217 = vpop.f32.mrb[0].mxu0
  %v218 = vpop.f32.mrb[0].mxu0
  %v219 = vadd.f32 %v46, %v218
  %v220 = vpop.f32.mrb[0].mxu0
  %221 = vdwg.mxu0
  %v222 = vmul.f32 %v160, 0.5
  %v223 = vmul.f32 %v163, 0.5
  %v224 = vmul.f32 %v168, 0.5
  %v225 = vmul.f32 %v171, 0.5
  %v226 = vmul.f32 %v176, 0.5
  %v227 = vmul.f32 %v179, 0.5
  %v228 = vmul.f32 %v184, 0.5
  %v229 = vmul.f32 %v187, 0.5
  %v230 = vmul.f32 %v192, 0.5
  %v231 = vmul.f32 %v195, 0.5
  %v232 = vmul.f32 %v200, 0.5
  %v233 = vmul.f32 %v203, 0.5
  %v234 = vmul.f32 %v208, 0.5
  %v235 = vmul.f32 %v211, 0.5
  %v236 = vmul.f32 %v216, 0.5
  %v237 = vmul.f32 %v219, 0.5
  %v238 = vmul.f32 %v160, 0.70710677
  %v239 = vmul.f32 %v163, 0.70710677
  %v240 = vmul.f32 %v168, 0.70710677
  %v241 = vmul.f32 %v171, 0.70710677
  %v242 = vmul.f32 %v176, 0.70710677
  %v243 = vmul.f32 %v179, 0.70710677
  %v244 = vmul.f32 %v184, 0.70710677
  %v245 = vmul.f32 %v187, 0.70710677
  %v246 = vmul.f32 %v192, 0.70710677
  %v247 = vmul.f32 %v195, 0.70710677
  %v248 = vmul.f32 %v200, 0.70710677
  %v249 = vmul.f32 %v203, 0.70710677
  %v250 = vmul.f32 %v208, 0.70710677
  %v251 = vmul.f32 %v211, 0.70710677
  %v252 = vmul.f32 %v216, 0.70710677
  %v253 = vmul.f32 %v219, 0.70710677
  %v254 = verf.f32.pop %v238
  %v255 = verf.f32.pop %v239
  %v256 = verf.f32.pop %v240
  %v257 = verf.f32.pop %v241
  %v258 = verf.f32.pop %v242
  %v259 = verf.f32.pop %v243
  %v260 = verf.f32.pop %v244
  %v261 = verf.f32.pop %v245
  %v262 = verf.f32.pop %v246
  %v263 = verf.f32.pop %v247
  %v264 = verf.f32.pop %v248
  %v265 = verf.f32.pop %v249
  %v266 = verf.f32.pop %v250
  %v267 = verf.f32.pop %v251
  %v268 = verf.f32.pop %v252
  %v269 = verf.f32.pop %v253
  %v270 = vadd.f32 %v254, 1.0
  %v271 = vadd.f32 %v255, 1.0
  %v272 = vadd.f32 %v256, 1.0
  %v273 = vadd.f32 %v257, 1.0
  %v274 = vadd.f32 %v258, 1.0
  %v275 = vadd.f32 %v259, 1.0
  %v276 = vadd.f32 %v260, 1.0
  %v277 = vadd.f32 %v261, 1.0
  %v278 = vadd.f32 %v262, 1.0
  %v279 = vadd.f32 %v263, 1.0
  %v280 = vadd.f32 %v264, 1.0
  %v281 = vadd.f32 %v265, 1.0
  %v282 = vadd.f32 %v266, 1.0
  %v283 = vadd.f32 %v267, 1.0
  %v284 = vadd.f32 %v268, 1.0
  %v285 = vadd.f32 %v269, 1.0
  %v286 = vmul.f32 %v222, %v270
  %v287 = vmul.f32 %v223, %v271
  %v288 = vmul.f32 %v224, %v272
  %v289 = vmul.f32 %v225, %v273
  %v290 = vmul.f32 %v226, %v274
  %v291 = vmul.f32 %v227, %v275
  %v292 = vmul.f32 %v228, %v276
  %v293 = vmul.f32 %v229, %v277
  %v294 = vmul.f32 %v230, %v278
  %v295 = vmul.f32 %v231, %v279
  %v296 = vmul.f32 %v232, %v280
  %v297 = vmul.f32 %v233, %v281
  %v298 = vmul.f32 %v234, %v282
  %v299 = vmul.f32 %v235, %v283
  %v300 = vmul.f32 %v236, %v284
  %v301 = vmul.f32 %v237, %v285
  %v302 = vpack.c.bf16 %v287, %v286
  %v303 = vpack.c.bf16 %v289, %v288
  %v304 = vpack.c.bf16 %v291, %v290
  %v305 = vpack.c.bf16 %v293, %v292
  %v306 = vpack.c.bf16 %v295, %v294
  %v307 = vpack.c.bf16 %v297, %v296
  %v308 = vpack.c.bf16 %v299, %v298
  %v309 = vpack.c.bf16 %v301, %v300
  %v310 = vld [vmem:[%s3] sm:$0xf]
  %v311 = vld [vmem:[%s3 + $0x4] sm:$0xf]
  %v312 = vld [vmem:[%s3 + $0x8] sm:$0xf]
  %v313 = vld [vmem:[%s3 + $0xc] sm:$0xf]
  %v314 = vld [vmem:[%s3 + $0x10] sm:$0xf]
  %v315 = vld [vmem:[%s3 + $0x14] sm:$0xf]
  %v316 = vld [vmem:[%s3 + $0x18] sm:$0xf]
  %v317 = vld [vmem:[%s3 + $0x1c] sm:$0xf]
  %v318 = vld [vmem:[%s4] sm:$0x1]
  %v320 = vlaneseq
  %v321 = vshrl.u32 %v320, 7
  %v322 = vsub.s32 0, %v321
  %v323 = vrot.slane %v318, %v322
  %v333 = vunpack.c.l.b16 %v310
  %v334 = vunpack.c.l.b16 %v311
  %v335 = vunpack.c.l.b16 %v312
  %v336 = vunpack.c.l.b16 %v313
  %v337 = vunpack.c.l.b16 %v314
  %v338 = vunpack.c.l.b16 %v315
  %v339 = vunpack.c.l.b16 %v316
  %v340 = vunpack.c.l.b16 %v317
  %v341 = vpack.c.b16 %v334, %v333
  %v342 = vpack.c.b16 %v336, %v335
  %v343 = vpack.c.b16 %v338, %v337
  %v344 = vpack.c.b16 %v340, %v339
  %vm349 = vcmask 523264
  %v351 = vsel %vm349, %v302, 0
  %v354 = vsel %vm349, %v303, 0
  %v357 = vsel %vm349, %v304, 0
  %v360 = vsel %vm349, %v305, 0
  %v363 = vsel %vm349, %v306, 0
  %v366 = vsel %vm349, %v307, 0
  %v369 = vsel %vm349, %v308, 0
  %v372 = vsel %vm349, %v309, 0
  %374 = vmatprep.subr.bf16.mxu0 0
  %375 = vmatpush1.bf16.msra.mxu0 %v341
  %376 = vmatprep.subr.bf16.mxu0 0
  %377 = vmatpush1.bf16.msra.mxu0 %v342
  %378 = vmatprep.subr.bf16.mxu0 0
  %379 = vmatpush1.bf16.msra.mxu0 %v343
  %380 = vmatprep.subr.bf16.mxu0 0
  %381 = vmatpush1.bf16.msra.mxu0 %v344
  %382 = vmatprep.subr.bf16.mxu0 0
  %383 = vmatpush1.bf16.msra.mxu0 0
  %384 = vmatprep.subr.bf16.mxu0 0
  %385 = vmatpush1.bf16.msra.mxu0 0
  %386 = vmatprep.subr.bf16.mxu0 0
  %387 = vmatpush1.bf16.msra.mxu0 0
  %388 = vmatprep.subr.bf16.mxu0 0
  %389 = vmatpush1.bf16.msra.mxu0 0
  %390 = vmatprep.subr.bf16.mxu0 0
  %391 = vmatpush1.bf16.msra.mxu0 0
  %392 = vmatprep.subr.bf16.mxu0 0
  %393 = vmatpush1.bf16.msra.mxu0 0
  %394 = vmatprep.subr.bf16.mxu0 0
  %395 = vmatpush1.bf16.msra.mxu0 0
  %396 = vmatprep.subr.bf16.mxu0 0
  %397 = vmatpush1.bf16.msra.mxu0 0
  %398 = vmatprep.subr.bf16.mxu0 0
  %399 = vmatpush1.bf16.msra.mxu0 0
  %400 = vmatprep.subr.bf16.mxu0 0
  %401 = vmatpush1.bf16.msra.mxu0 0
  %402 = vmatprep.subr.bf16.mxu0 0
  %403 = vmatpush1.bf16.msra.mxu0 0
  %404 = vmatprep.subr.bf16.mxu0 0
  %405 = vmatpush1.bf16.msra.mxu0 0
  %406 = vmatprep.mubr.bf16.mxu0 0
  %407 = vmatmul.mubr.bf16.gmra.mrb[0].mxu0 %v351
  %v408 = vpop.f32.mrb[0].mxu0
  %v409 = vadd.f32 %v323, %v408
  %v410 = vpop.f32.mrb[0].mxu0
  %v411 = vpop.f32.mrb[0].mxu0
  %v412 = vadd.f32 %v323, %v411
  %v413 = vpop.f32.mrb[0].mxu0
  %414 = vmatprep.mubr.bf16.mxu0 0
  %415 = vmatmul.mubr.bf16.gmra.mrb[0].mxu0 %v354
  %v416 = vpop.f32.mrb[0].mxu0
  %v417 = vadd.f32 %v323, %v416
  %v418 = vpop.f32.mrb[0].mxu0
  %v419 = vpop.f32.mrb[0].mxu0
  %v420 = vadd.f32 %v323, %v419
  %v421 = vpop.f32.mrb[0].mxu0
  %422 = vmatprep.mubr.bf16.mxu0 0
  %423 = vmatmul.mubr.bf16.gmra.mrb[0].mxu0 %v357
  %v424 = vpop.f32.mrb[0].mxu0
  %v425 = vadd.f32 %v323, %v424
  %v426 = vpop.f32.mrb[0].mxu0
  %v427 = vpop.f32.mrb[0].mxu0
  %v428 = vadd.f32 %v323, %v427
  %v429 = vpop.f32.mrb[0].mxu0
  %430 = vmatprep.mubr.bf16.mxu0 0
  %431 = vmatmul.mubr.bf16.gmra.mrb[0].mxu0 %v360
  %v432 = vpop.f32.mrb[0].mxu0
  %v433 = vadd.f32 %v323, %v432
  %v434 = vpop.f32.mrb[0].mxu0
  %v435 = vpop.f32.mrb[0].mxu0
  %v436 = vadd.f32 %v323, %v435
  %v437 = vpop.f32.mrb[0].mxu0
  %438 = vmatprep.mubr.bf16.mxu0 0
  %439 = vmatmul.mubr.bf16.gmra.mrb[0].mxu0 %v363
  %v440 = vpop.f32.mrb[0].mxu0
  %v441 = vadd.f32 %v323, %v440
  %v442 = vpop.f32.mrb[0].mxu0
  %v443 = vpop.f32.mrb[0].mxu0
  %v444 = vadd.f32 %v323, %v443
  %v445 = vpop.f32.mrb[0].mxu0
  %446 = vmatprep.mubr.bf16.mxu0 0
  %447 = vmatmul.mubr.bf16.gmra.mrb[0].mxu0 %v366
  %v448 = vpop.f32.mrb[0].mxu0
  %v449 = vadd.f32 %v323, %v448
  %v450 = vpop.f32.mrb[0].mxu0
  %v451 = vpop.f32.mrb[0].mxu0
  %v452 = vadd.f32 %v323, %v451
  %v453 = vpop.f32.mrb[0].mxu0
  %454 = vmatprep.mubr.bf16.mxu0 0
  %455 = vmatmul.mubr.bf16.gmra.mrb[0].mxu0 %v369
  %v456 = vpop.f32.mrb[0].mxu0
  %v457 = vadd.f32 %v323, %v456
  %v458 = vpop.f32.mrb[0].mxu0
  %v459 = vpop.f32.mrb[0].mxu0
  %v460 = vadd.f32 %v323, %v459
  %v461 = vpop.f32.mrb[0].mxu0
  %462 = vmatprep.mubr.bf16.mxu0 0
  %463 = vmatmul.mubr.bf16.gmra.mrb[0].mxu0 %v372
  %v464 = vpop.f32.mrb[0].mxu0
  %v465 = vadd.f32 %v323, %v464
  %v466 = vpop.f32.mrb[0].mxu0
  %v467 = vpop.f32.mrb[0].mxu0
  %v468 = vadd.f32 %v323, %v467
  %v469 = vpop.f32.mrb[0].mxu0
  %470 = vdwg.mxu0
  %471 = vst.msk [vmem:[%s5] sm:$0xff] %vm100, %v409
  %472 = vst.msk [vmem:[%s5 + $0x8] sm:$0xff] %vm100, %v412
  %473 = vst.msk [vmem:[%s5 + $0x10] sm:$0xff] %vm100, %v417
  %474 = vst.msk [vmem:[%s5 + $0x18] sm:$0xff] %vm100, %v420
  %475 = vst.msk [vmem:[%s5 + $0x20] sm:$0xff] %vm100, %v425
  %476 = vst.msk [vmem:[%s5 + $0x28] sm:$0xff] %vm100, %v428
  %477 = vst.msk [vmem:[%s5 + $0x30] sm:$0xff] %vm100, %v433
  %478 = vst.msk [vmem:[%s5 + $0x38] sm:$0xff] %vm100, %v436
  %479 = vst.msk [vmem:[%s5 + $0x40] sm:$0xff] %vm100, %v441
  %480 = vst.msk [vmem:[%s5 + $0x48] sm:$0xff] %vm100, %v444
  %481 = vst.msk [vmem:[%s5 + $0x50] sm:$0xff] %vm100, %v449
  %482 = vst.msk [vmem:[%s5 + $0x58] sm:$0xff] %vm100, %v452
  %483 = vst.msk [vmem:[%s5 + $0x60] sm:$0xff] %vm100, %v457
  %484 = vst.msk [vmem:[%s5 + $0x68] sm:$0xff] %vm100, %v460
  %485 = vst.msk [vmem:[%s5 + $0x70] sm:$0xff] %vm100, %v465
  %486 = vst.msk [vmem:[%s5 + $0x78] sm:$0xff] %vm100, %v468
  // Predicated region
  $region22: #{mlp_pallas.1} parent=0 // pred_check
    _
  $region23: #{mlp_pallas.1} parent=0 // pred_check_branch
    %488 = sbr.rel (0) target = $region25
  $region24: #{mlp_pallas.1} parent=0 // pred_region
    _
  $region25: #{mlp_pallas.1} parent=0 // pred_fallthru
    _
  // Predicated region
  $region26: #{mlp_pallas.1} parent=0 // pred_check
    _
  $region27: #{mlp_pallas.1} parent=0 // pred_check_branch
    %490 = sbr.rel (0) target = $region29
  $region28: #{mlp_pallas.1} parent=0 // pred_region
    _
  $region29: #{mlp_pallas.1} parent=0 // pred_fallthru
    _

</llo_original>
